<compile_context>
chip_gen: v7x
topology: tpu7x:2x2x1
jax: 0.10.0
libtpu: 0.0.40
codegen_flags: <defaults>
</compile_context>

<pallas_src>
import functools
import math

import jax
import jax.numpy as jnp
from jax.experimental import pallas as pl
from jax.experimental.pallas import tpu as pltpu

L_MAX = 3                         # module "parameter" (no learned weights)
N_SH = (L_MAX + 1) ** 2           # 16
LANES = 128                       # samples live on lanes
BLOCK_ROWS = 512                  # 512 rows * 128 lanes = 64K samples / step

# Smallest normal f32.  Inputs with |r| below ~1.1e-19 (r^2 underflowing past
# this floor) collapse toward (Y00, 0, ...) instead of the exact unit-direction
# values; sphericart divides by the actual norm, which has the same f32
# underflow edge case.  Documented per the correctness review.
_R2_FLOOR = 1.1754944e-38


def _prefactors(l_max):
    """Normalization constants F[(l, m)] for m >= 0 (sqrt(2) folded for m>0)."""
    F = {}
    for l in range(l_max + 1):
        for m in range(l + 1):
            f = math.sqrt(
                (2 * l + 1) / (4.0 * math.pi)
                * math.factorial(l - m) / math.factorial(l + m)
            )
            if m > 0:
                f *= math.sqrt(2.0)
            F[(l, m)] = float(f)
    return F


def _sh_kernel(xyz_ref, out_ref, *, l_max):
    # xyz_ref: (3, R, 128), out_ref: (N_SH, R, 128) -- full (R, 128) tiles.
    x = xyz_ref[0].astype(jnp.float32)
    y = xyz_ref[1].astype(jnp.float32)
    z = xyz_ref[2].astype(jnp.float32)
    dt = out_ref.dtype

    # Normalize the direction (SphericalHarmonics, not SolidHarmonics).
    r2 = x * x + y * y + z * z
    rinv = jax.lax.rsqrt(jnp.maximum(r2, _R2_FLOOR))   # EUP
    x = x * rinv
    y = y * rinv
    z = z * rinv

    F = _prefactors(l_max)

    # c[m] = Re[(x+iy)^m], s[m] = Im[(x+iy)^m]  (m >= 1).
    c = [None] * (l_max + 1)
    s = [None] * (l_max + 1)
    if l_max >= 1:
        c[1], s[1] = x, y
    for m in range(2, l_max + 1):
        c[m] = c[m - 1] * x - s[m - 1] * y
        s[m] = s[m - 1] * x + c[m - 1] * y

    # Q[l][m] = Pbar_l^m(z) / (1-z^2)^(m/2): associated Legendre without the
    # Condon-Shortley phase, sin^m(theta) pulled out.  Diagonal terms are
    # compile-time Python floats.
    Q = [[None] * (l_max + 1) for _ in range(l_max + 1)]
    Q[0][0] = 1.0
    for m in range(1, l_max + 1):
        Q[m][m] = float(2 * m - 1) * Q[m - 1][m - 1]
    for m in range(0, l_max):
        Q[m + 1][m] = (float(2 * m + 1) * Q[m][m]) * z
    for m in range(0, l_max + 1):
        for l in range(m + 2, l_max + 1):
            Q[l][m] = (
                float(2 * l - 1) * z * Q[l - 1][m]
                - float(l + m - 1) * Q[l - 2][m]
            ) * (1.0 / float(l - m))

    # One full (R, 128) unmasked slab store per (l, m); idx = l*l + l + m.
    for l in range(l_max + 1):
        base = l * l + l
        v0 = F[(l, 0)] * Q[l][0]
        if isinstance(v0, float):                 # only l == 0: constant splat
            v0 = jnp.full(x.shape, v0, dtype=jnp.float32)
        out_ref[base] = v0.astype(dt)
        for m in range(1, l + 1):
            fq = F[(l, m)] * Q[l][m]              # hoisted; scalar when l == m
            out_ref[base + m] = (fq * c[m]).astype(dt)
            out_ref[base - m] = (fq * s[m]).astype(dt)


def _round_up(a, b):
    return ((a + b - 1) // b) * b


def _largest_divisor_leq(n, cap):
    cap = max(1, min(cap, n))
    for d in range(cap, 0, -1):
        if n % d == 0:
            return d
    return 1


def _pallas_sh(xyz_t, *, l_max, block_rows, num_blocks, out_dtype):
    """Run the kernel on packed (3, rows, 128) data; rows = block_rows*num_blocks."""
    n_sh = (l_max + 1) ** 2
    total_rows = block_rows * num_blocks
    n_pad = total_rows * LANES

    in_bytes = 3 * n_pad * jnp.dtype(xyz_t.dtype).itemsize
    out_bytes = n_sh * n_pad * jnp.dtype(out_dtype).itemsize
    cost = pl.CostEstimate(
        flops=64 * n_pad,            # ~64 VPU flops / sample for l_max = 3
        transcendentals=n_pad,       # one rsqrt / sample
        bytes_accessed=in_bytes + out_bytes,
    )

    return pl.pallas_call(
        functools.partial(_sh_kernel, l_max=l_max),
        out_shape=jax.ShapeDtypeStruct((n_sh, total_rows, LANES), out_dtype),
        grid_spec=pltpu.PrefetchScalarGridSpec(
            num_scalar_prefetch=0,
            grid=(num_blocks,),
            in_specs=[pl.BlockSpec((3, block_rows, LANES), lambda i: (0, i, 0))],
            out_specs=pl.BlockSpec((n_sh, block_rows, LANES), lambda i: (0, i, 0)),
        ),
        compiler_params=pltpu.CompilerParams(dimension_semantics=("parallel",)),
        cost_estimate=cost,
    )(xyz_t)


def spherical_harmonics_packed(xyz_packed, l_max=L_MAX, out_dtype=None,
                               block_rows=BLOCK_ROWS):
    """Zero-copy fast path (review item #1/#2).

    xyz_packed: (3, rows, 128) with rows % 16 == 0 (sample j lives at
    [:, j // 128, j % 128]).  Returns ((l_max+1)**2, rows, 128) in the same
    packing; no wrapper-side transposes or pads touch HBM.
    """
    three, rows, lanes = xyz_packed.shape
    if three != 3 or lanes != LANES or rows % 16 != 0:
        raise ValueError("xyz_packed must be (3, rows, 128) with rows % 16 == 0")
    out_dtype = xyz_packed.dtype if out_dtype is None else out_dtype

    r16 = rows // 16
    cap16 = max(block_rows // 16, 1)
    if r16 >= 2:
        # >= 2 grid steps so both v7x TensorCores get work (parallel axis).
        cap16 = min(cap16, max(r16 // 2, 1))
    br = 16 * _largest_divisor_leq(r16, cap16)   # exact tiling, balanced blocks
    nb = rows // br
    return _pallas_sh(xyz_packed, l_max=l_max, block_rows=br, num_blocks=nb,
                      out_dtype=out_dtype)


def spherical_harmonics(xyz, l_max=L_MAX, out_dtype=None, block_rows=BLOCK_ROWS):
    """Torch-compatible path: xyz (n_samples, 3) -> (n_samples, (l_max+1)**2)."""
    n = xyz.shape[0]
    n_sh = (l_max + 1) ** 2
    out_dtype = xyz.dtype if out_dtype is None else out_dtype

    rows = max(pl.cdiv(n, LANES), 1)
    # Balanced blocks (no "last block is all padding" cliff) and >= 2 grid
    # steps for megacore whenever the input is reasonably sized.
    nb = max(pl.cdiv(rows, block_rows), 2 if rows >= 16 else 1)
    br = _round_up(pl.cdiv(rows, nb), 16)        # 16: bf16-friendly sublane tile
    total_rows = nb * br
    n_pad = total_rows * LANES

    # One fused transpose+pad pass (~24 B/sample); the trailing reshape is a
    # free bitcast.  Pad with 1.0 so r != 0 in the pad region.
    xyz_t = jnp.pad(xyz.T, ((0, 0), (0, n_pad - n)),
                    constant_values=1.0).reshape(3, total_rows, LANES)

    out_t = _pallas_sh(xyz_t, l_max=l_max, block_rows=br, num_blocks=nb,
                       out_dtype=out_dtype)

    # TODO(synk): the torch (n, N_SH) layout costs one (N_SH, n) -> (n, N_SH)
    # transpose here (~128 B/sample of extra HBM traffic).  Downstream
    # consumers should use spherical_harmonics_packed() to avoid it entirely.
    return out_t.reshape(n_sh, n_pad)[:, :n].T


if __name__ == "__main__":
    key0, key1 = jax.random.split(jax.random.PRNGKey(0))

    # ---- torch-layout path, ragged n, including an all-zero row ----
    n_rand = 999
    xyz_rand = jax.random.normal(key0, (n_rand, 3), dtype=jnp.float32)
    xyz = jnp.concatenate([xyz_rand, jnp.zeros((1, 3), jnp.float32)], axis=0)
    n_samples = xyz.shape[0]

    sh_fn = jax.jit(spherical_harmonics,
                    static_argnames=("l_max", "out_dtype", "block_rows"))
    sh = jax.block_until_ready(sh_fn(xyz))

    assert sh.shape == (n_samples, N_SH), sh.shape
    assert bool(jnp.all(jnp.isfinite(sh)))

    # Y_00 is the constant 1 / (2 sqrt(pi)).
    y00 = 0.5 / math.sqrt(math.pi)
    assert bool(jnp.allclose(sh[:, 0], y00, atol=1e-5))

    # l = 1 closed forms: sqrt(3/4pi) * (y, z, x) / r.
    r = jnp.linalg.norm(xyz_rand, axis=1, keepdims=True)
    u = xyz_rand / r
    f1 = math.sqrt(3.0 / (4.0 * math.pi))
    ref_l1 = f1 * jnp.stack([u[:, 1], u[:, 2], u[:, 0]], axis=1)
    assert bool(jnp.allclose(sh[:n_rand, 1:4], ref_l1, atol=1e-5))

    # l = 2, m = 0 closed form: 0.25 * sqrt(5/pi) * (3 z^2 - 1).
    ref_y20 = 0.25 * math.sqrt(5.0 / math.pi) * (3.0 * u[:, 2] ** 2 - 1.0)
    assert bool(jnp.allclose(sh[:n_rand, 6], ref_y20, atol=1e-5))

    # ---- packed fast path (zero wrapper copies) agrees with the torch path ----
    n_pk = 4096
    xyz_pk = jax.random.normal(key1, (n_pk, 3), dtype=jnp.float32)
    packed_in = xyz_pk.T.reshape(3, n_pk // LANES, LANES)
    pk_fn = jax.jit(spherical_harmonics_packed,
                    static_argnames=("l_max", "out_dtype", "block_rows"))
    sh_pk = jax.block_until_ready(pk_fn(packed_in))
    assert sh_pk.shape == (N_SH, n_pk // LANES, LANES), sh_pk.shape
    sh_pk_rows = sh_pk.reshape(N_SH, n_pk).T
    sh_ref = jax.block_until_ready(sh_fn(xyz_pk))
    assert bool(jnp.allclose(sh_pk_rows, sh_ref, atol=1e-6))

    # ---- bf16 output path: f32 compute, narrow store ----
    sh_bf16 = jax.block_until_ready(sh_fn(xyz, out_dtype=jnp.bfloat16))
    assert sh_bf16.dtype == jnp.bfloat16
    assert bool(jnp.allclose(sh_bf16.astype(jnp.float32), sh, atol=1.5e-2))

    print("KERNEL_OK")
</pallas_src>

<mosaic_0001>
module attributes {stable_mosaic.version = 11 : i64} {
  func.func @_sh_kernel(%arg0: i32, %arg1: memref<3x16x128xf32, #tpu.memory_space<vmem>>, %arg2: memref<16x16x128xf32, #tpu.memory_space<vmem>>) attributes {dimension_semantics = [#tpu.dimension_semantics<parallel>], iteration_bounds = array<i64: 1>, scalar_prefetch = 0 : i64, scratch_operands = 0 : i64, tpu.core_type = #tpu.core_type<tc>, window_params = [{transform_indices = @transform_0, window_bounds = array<i64: 3, 16, 128>}, {transform_indices = @transform_1, window_bounds = array<i64: 16, 16, 128>}]} {
    %c0 = arith.constant 0 : index
    %c0_0 = arith.constant 0 : index
    %c0_1 = arith.constant 0 : index
    %0 = vector.load %arg1[%c0, %c0_0, %c0_1] : memref<3x16x128xf32, #tpu.memory_space<vmem>>, vector<1x16x128xf32>
    %1 = vector.shape_cast %0 : vector<1x16x128xf32> to vector<16x128xf32>
    %c1 = arith.constant 1 : index
    %c0_2 = arith.constant 0 : index
    %c0_3 = arith.constant 0 : index
    %2 = vector.load %arg1[%c1, %c0_2, %c0_3] : memref<3x16x128xf32, #tpu.memory_space<vmem>>, vector<1x16x128xf32>
    %3 = vector.shape_cast %2 : vector<1x16x128xf32> to vector<16x128xf32>
    %c2 = arith.constant 2 : index
    %c0_4 = arith.constant 0 : index
    %c0_5 = arith.constant 0 : index
    %4 = vector.load %arg1[%c2, %c0_4, %c0_5] : memref<3x16x128xf32, #tpu.memory_space<vmem>>, vector<1x16x128xf32>
    %5 = vector.shape_cast %4 : vector<1x16x128xf32> to vector<16x128xf32>
    %6 = arith.mulf %1, %1 : vector<16x128xf32>
    %7 = arith.mulf %3, %3 : vector<16x128xf32>
    %8 = arith.addf %6, %7 : vector<16x128xf32>
    %9 = arith.mulf %5, %5 : vector<16x128xf32>
    %10 = arith.addf %8, %9 : vector<16x128xf32>
    %cst = arith.constant 1.17549435E-38 : f32
    %11 = vector.broadcast %cst : f32 to vector<16x128xf32>
    %12 = arith.maximumf %10, %11 : vector<16x128xf32>
    %13 = math.rsqrt %12 : vector<16x128xf32>
    %14 = arith.mulf %1, %13 : vector<16x128xf32>
    %15 = arith.mulf %3, %13 : vector<16x128xf32>
    %16 = arith.mulf %5, %13 : vector<16x128xf32>
    %17 = arith.mulf %14, %14 : vector<16x128xf32>
    %18 = arith.mulf %15, %15 : vector<16x128xf32>
    %19 = arith.subf %17, %18 : vector<16x128xf32>
    %20 = arith.mulf %15, %14 : vector<16x128xf32>
    %21 = arith.mulf %14, %15 : vector<16x128xf32>
    %22 = arith.addf %20, %21 : vector<16x128xf32>
    %23 = arith.mulf %19, %14 : vector<16x128xf32>
    %24 = arith.mulf %22, %15 : vector<16x128xf32>
    %25 = arith.subf %23, %24 : vector<16x128xf32>
    %26 = arith.mulf %22, %14 : vector<16x128xf32>
    %27 = arith.mulf %19, %15 : vector<16x128xf32>
    %28 = arith.addf %26, %27 : vector<16x128xf32>
    %cst_6 = arith.constant 1.000000e+00 : f32
    %29 = vector.broadcast %cst_6 : f32 to vector<16x128xf32>
    %30 = arith.mulf %29, %16 : vector<16x128xf32>
    %cst_7 = arith.constant 3.000000e+00 : f32
    %31 = vector.broadcast %cst_7 : f32 to vector<16x128xf32>
    %32 = arith.mulf %31, %16 : vector<16x128xf32>
    %cst_8 = arith.constant 1.500000e+01 : f32
    %33 = vector.broadcast %cst_8 : f32 to vector<16x128xf32>
    %34 = arith.mulf %33, %16 : vector<16x128xf32>
    %cst_9 = arith.constant 3.000000e+00 : f32
    %35 = vector.broadcast %cst_9 : f32 to vector<16x128xf32>
    %36 = arith.mulf %35, %16 : vector<16x128xf32>
    %37 = arith.mulf %36, %30 : vector<16x128xf32>
    %cst_10 = arith.constant 1.000000e+00 : f32
    %38 = vector.broadcast %cst_10 : f32 to vector<16x128xf32>
    %39 = arith.subf %37, %38 : vector<16x128xf32>
    %cst_11 = arith.constant 5.000000e-01 : f32
    %40 = vector.broadcast %cst_11 : f32 to vector<16x128xf32>
    %41 = arith.mulf %39, %40 : vector<16x128xf32>
    %cst_12 = arith.constant 5.000000e+00 : f32
    %42 = vector.broadcast %cst_12 : f32 to vector<16x128xf32>
    %43 = arith.mulf %42, %16 : vector<16x128xf32>
    %44 = arith.mulf %43, %41 : vector<16x128xf32>
    %cst_13 = arith.constant 2.000000e+00 : f32
    %45 = vector.broadcast %cst_13 : f32 to vector<16x128xf32>
    %46 = arith.mulf %45, %30 : vector<16x128xf32>
    %47 = arith.subf %44, %46 : vector<16x128xf32>
    %cst_14 = arith.constant 0.333333343 : f32
    %48 = vector.broadcast %cst_14 : f32 to vector<16x128xf32>
    %49 = arith.mulf %47, %48 : vector<16x128xf32>
    %cst_15 = arith.constant 5.000000e+00 : f32
    %50 = vector.broadcast %cst_15 : f32 to vector<16x128xf32>
    %51 = arith.mulf %50, %16 : vector<16x128xf32>
    %52 = arith.mulf %51, %32 : vector<16x128xf32>
    %cst_16 = arith.constant 3.000000e+00 : f32
    %53 = vector.broadcast %cst_16 : f32 to vector<16x128xf32>
    %54 = arith.subf %52, %53 : vector<16x128xf32>
    %cst_17 = arith.constant 5.000000e-01 : f32
    %55 = vector.broadcast %cst_17 : f32 to vector<16x128xf32>
    %56 = arith.mulf %54, %55 : vector<16x128xf32>
    %cst_18 = arith.constant 0.282094806 : f32
    %57 = vector.broadcast %cst_18 : f32 to vector<16x128xf32>
    %c0_19 = arith.constant 0 : index
    %c0_20 = arith.constant 0 : index
    %c0_21 = arith.constant 0 : index
    %58 = vector.load %arg2[%c0_19, %c0_20, %c0_21] : memref<16x16x128xf32, #tpu.memory_space<vmem>>, vector<1x16x128xf32>
    %59 = vector.shape_cast %58 : vector<1x16x128xf32> to vector<16x128xf32>
    %60 = vector.shape_cast %57 : vector<16x128xf32> to vector<1x16x128xf32>
    tpu.vector_store %arg2[%c0_19, %c0_20, %c0_21], %60 {strides = array<i32>} : memref<16x16x128xf32, #tpu.memory_space<vmem>>, vector<1x16x128xf32>,
    %cst_22 = arith.constant 0.488602519 : f32
    %61 = vector.broadcast %cst_22 : f32 to vector<16x128xf32>
    %62 = arith.mulf %61, %30 : vector<16x128xf32>
    %c2_23 = arith.constant 2 : index
    %c0_24 = arith.constant 0 : index
    %c0_25 = arith.constant 0 : index
    %63 = vector.load %arg2[%c2_23, %c0_24, %c0_25] : memref<16x16x128xf32, #tpu.memory_space<vmem>>, vector<1x16x128xf32>
    %64 = vector.shape_cast %63 : vector<1x16x128xf32> to vector<16x128xf32>
    %65 = vector.shape_cast %62 : vector<16x128xf32> to vector<1x16x128xf32>
    tpu.vector_store %arg2[%c2_23, %c0_24, %c0_25], %65 {strides = array<i32>} : memref<16x16x128xf32, #tpu.memory_space<vmem>>, vector<1x16x128xf32>,
    %cst_26 = arith.constant 0.488602519 : f32
    %66 = vector.broadcast %cst_26 : f32 to vector<16x128xf32>
    %67 = arith.mulf %66, %14 : vector<16x128xf32>
    %c3 = arith.constant 3 : index
    %c0_27 = arith.constant 0 : index
    %c0_28 = arith.constant 0 : index
    %68 = vector.load %arg2[%c3, %c0_27, %c0_28] : memref<16x16x128xf32, #tpu.memory_space<vmem>>, vector<1x16x128xf32>
    %69 = vector.shape_cast %68 : vector<1x16x128xf32> to vector<16x128xf32>
    %70 = vector.shape_cast %67 : vector<16x128xf32> to vector<1x16x128xf32>
    tpu.vector_store %arg2[%c3, %c0_27, %c0_28], %70 {strides = array<i32>} : memref<16x16x128xf32, #tpu.memory_space<vmem>>, vector<1x16x128xf32>,
    %cst_29 = arith.constant 0.488602519 : f32
    %71 = vector.broadcast %cst_29 : f32 to vector<16x128xf32>
    %72 = arith.mulf %71, %15 : vector<16x128xf32>
    %c1_30 = arith.constant 1 : index
    %c0_31 = arith.constant 0 : index
    %c0_32 = arith.constant 0 : index
    %73 = vector.load %arg2[%c1_30, %c0_31, %c0_32] : memref<16x16x128xf32, #tpu.memory_space<vmem>>, vector<1x16x128xf32>
    %74 = vector.shape_cast %73 : vector<1x16x128xf32> to vector<16x128xf32>
    %75 = vector.shape_cast %72 : vector<16x128xf32> to vector<1x16x128xf32>
    tpu.vector_store %arg2[%c1_30, %c0_31, %c0_32], %75 {strides = array<i32>} : memref<16x16x128xf32, #tpu.memory_space<vmem>>, vector<1x16x128xf32>,
    %cst_33 = arith.constant 0.63078314 : f32
    %76 = vector.broadcast %cst_33 : f32 to vector<16x128xf32>
    %77 = arith.mulf %76, %41 : vector<16x128xf32>
    %c6 = arith.constant 6 : index
    %c0_34 = arith.constant 0 : index
    %c0_35 = arith.constant 0 : index
    %78 = vector.load %arg2[%c6, %c0_34, %c0_35] : memref<16x16x128xf32, #tpu.memory_space<vmem>>, vector<1x16x128xf32>
    %79 = vector.shape_cast %78 : vector<1x16x128xf32> to vector<16x128xf32>
    %80 = vector.shape_cast %77 : vector<16x128xf32> to vector<1x16x128xf32>
    tpu.vector_store %arg2[%c6, %c0_34, %c0_35], %80 {strides = array<i32>} : memref<16x16x128xf32, #tpu.memory_space<vmem>>, vector<1x16x128xf32>,
    %cst_36 = arith.constant 0.3641828 : f32
    %81 = vector.broadcast %cst_36 : f32 to vector<16x128xf32>
    %82 = arith.mulf %81, %32 : vector<16x128xf32>
    %83 = arith.mulf %82, %14 : vector<16x128xf32>
    %c7 = arith.constant 7 : index
    %c0_37 = arith.constant 0 : index
    %c0_38 = arith.constant 0 : index
    %84 = vector.load %arg2[%c7, %c0_37, %c0_38] : memref<16x16x128xf32, #tpu.memory_space<vmem>>, vector<1x16x128xf32>
    %85 = vector.shape_cast %84 : vector<1x16x128xf32> to vector<16x128xf32>
    %86 = vector.shape_cast %83 : vector<16x128xf32> to vector<1x16x128xf32>
    tpu.vector_store %arg2[%c7, %c0_37, %c0_38], %86 {strides = array<i32>} : memref<16x16x128xf32, #tpu.memory_space<vmem>>, vector<1x16x128xf32>,
    %87 = arith.mulf %82, %15 : vector<16x128xf32>
    %c5 = arith.constant 5 : index
    %c0_39 = arith.constant 0 : index
    %c0_40 = arith.constant 0 : index
    %88 = vector.load %arg2[%c5, %c0_39, %c0_40] : memref<16x16x128xf32, #tpu.memory_space<vmem>>, vector<1x16x128xf32>
    %89 = vector.shape_cast %88 : vector<1x16x128xf32> to vector<16x128xf32>
    %90 = vector.shape_cast %87 : vector<16x128xf32> to vector<1x16x128xf32>
    tpu.vector_store %arg2[%c5, %c0_39, %c0_40], %90 {strides = array<i32>} : memref<16x16x128xf32, #tpu.memory_space<vmem>>, vector<1x16x128xf32>,
    %cst_41 = arith.constant 0.546274245 : f32
    %91 = vector.broadcast %cst_41 : f32 to vector<16x128xf32>
    %92 = arith.mulf %91, %19 : vector<16x128xf32>
    %c8 = arith.constant 8 : index
    %c0_42 = arith.constant 0 : index
    %c0_43 = arith.constant 0 : index
    %93 = vector.load %arg2[%c8, %c0_42, %c0_43] : memref<16x16x128xf32, #tpu.memory_space<vmem>>, vector<1x16x128xf32>
    %94 = vector.shape_cast %93 : vector<1x16x128xf32> to vector<16x128xf32>
    %95 = vector.shape_cast %92 : vector<16x128xf32> to vector<1x16x128xf32>
    tpu.vector_store %arg2[%c8, %c0_42, %c0_43], %95 {strides = array<i32>} : memref<16x16x128xf32, #tpu.memory_space<vmem>>, vector<1x16x128xf32>,
    %cst_44 = arith.constant 0.546274245 : f32
    %96 = vector.broadcast %cst_44 : f32 to vector<16x128xf32>
    %97 = arith.mulf %96, %22 : vector<16x128xf32>
    %c4 = arith.constant 4 : index
    %c0_45 = arith.constant 0 : index
    %c0_46 = arith.constant 0 : index
    %98 = vector.load %arg2[%c4, %c0_45, %c0_46] : memref<16x16x128xf32, #tpu.memory_space<vmem>>, vector<1x16x128xf32>
    %99 = vector.shape_cast %98 : vector<1x16x128xf32> to vector<16x128xf32>
    %100 = vector.shape_cast %97 : vector<16x128xf32> to vector<1x16x128xf32>
    tpu.vector_store %arg2[%c4, %c0_45, %c0_46], %100 {strides = array<i32>} : memref<16x16x128xf32, #tpu.memory_space<vmem>>, vector<1x16x128xf32>,
    %cst_47 = arith.constant 0.746352672 : f32
    %101 = vector.broadcast %cst_47 : f32 to vector<16x128xf32>
    %102 = arith.mulf %101, %49 : vector<16x128xf32>
    %c12 = arith.constant 12 : index
    %c0_48 = arith.constant 0 : index
    %c0_49 = arith.constant 0 : index
    %103 = vector.load %arg2[%c12, %c0_48, %c0_49] : memref<16x16x128xf32, #tpu.memory_space<vmem>>, vector<1x16x128xf32>
    %104 = vector.shape_cast %103 : vector<1x16x128xf32> to vector<16x128xf32>
    %105 = vector.shape_cast %102 : vector<16x128xf32> to vector<1x16x128xf32>
    tpu.vector_store %arg2[%c12, %c0_48, %c0_49], %105 {strides = array<i32>} : memref<16x16x128xf32, #tpu.memory_space<vmem>>, vector<1x16x128xf32>,
    %cst_50 = arith.constant 0.304697186 : f32
    %106 = vector.broadcast %cst_50 : f32 to vector<16x128xf32>
    %107 = arith.mulf %106, %56 : vector<16x128xf32>
    %108 = arith.mulf %107, %14 : vector<16x128xf32>
    %c13 = arith.constant 13 : index
    %c0_51 = arith.constant 0 : index
    %c0_52 = arith.constant 0 : index
    %109 = vector.load %arg2[%c13, %c0_51, %c0_52] : memref<16x16x128xf32, #tpu.memory_space<vmem>>, vector<1x16x128xf32>
    %110 = vector.shape_cast %109 : vector<1x16x128xf32> to vector<16x128xf32>
    %111 = vector.shape_cast %108 : vector<16x128xf32> to vector<1x16x128xf32>
    tpu.vector_store %arg2[%c13, %c0_51, %c0_52], %111 {strides = array<i32>} : memref<16x16x128xf32, #tpu.memory_space<vmem>>, vector<1x16x128xf32>,
    %112 = arith.mulf %107, %15 : vector<16x128xf32>
    %c11 = arith.constant 11 : index
    %c0_53 = arith.constant 0 : index
    %c0_54 = arith.constant 0 : index
    %113 = vector.load %arg2[%c11, %c0_53, %c0_54] : memref<16x16x128xf32, #tpu.memory_space<vmem>>, vector<1x16x128xf32>
    %114 = vector.shape_cast %113 : vector<1x16x128xf32> to vector<16x128xf32>
    %115 = vector.shape_cast %112 : vector<16x128xf32> to vector<1x16x128xf32>
    tpu.vector_store %arg2[%c11, %c0_53, %c0_54], %115 {strides = array<i32>} : memref<16x16x128xf32, #tpu.memory_space<vmem>>, vector<1x16x128xf32>,
    %cst_55 = arith.constant 0.0963537171 : f32
    %116 = vector.broadcast %cst_55 : f32 to vector<16x128xf32>
    %117 = arith.mulf %116, %34 : vector<16x128xf32>
    %118 = arith.mulf %117, %19 : vector<16x128xf32>
    %c14 = arith.constant 14 : index
    %c0_56 = arith.constant 0 : index
    %c0_57 = arith.constant 0 : index
    %119 = vector.load %arg2[%c14, %c0_56, %c0_57] : memref<16x16x128xf32, #tpu.memory_space<vmem>>, vector<1x16x128xf32>
    %120 = vector.shape_cast %119 : vector<1x16x128xf32> to vector<16x128xf32>
    %121 = vector.shape_cast %118 : vector<16x128xf32> to vector<1x16x128xf32>
    tpu.vector_store %arg2[%c14, %c0_56, %c0_57], %121 {strides = array<i32>} : memref<16x16x128xf32, #tpu.memory_space<vmem>>, vector<1x16x128xf32>,
    %122 = arith.mulf %117, %22 : vector<16x128xf32>
    %c10 = arith.constant 10 : index
    %c0_58 = arith.constant 0 : index
    %c0_59 = arith.constant 0 : index
    %123 = vector.load %arg2[%c10, %c0_58, %c0_59] : memref<16x16x128xf32, #tpu.memory_space<vmem>>, vector<1x16x128xf32>
    %124 = vector.shape_cast %123 : vector<1x16x128xf32> to vector<16x128xf32>
    %125 = vector.shape_cast %122 : vector<16x128xf32> to vector<1x16x128xf32>
    tpu.vector_store %arg2[%c10, %c0_58, %c0_59], %125 {strides = array<i32>} : memref<16x16x128xf32, #tpu.memory_space<vmem>>, vector<1x16x128xf32>,
    %cst_60 = arith.constant 0.590043604 : f32
    %126 = vector.broadcast %cst_60 : f32 to vector<16x128xf32>
    %127 = arith.mulf %126, %25 : vector<16x128xf32>
    %c15 = arith.constant 15 : index
    %c0_61 = arith.constant 0 : index
    %c0_62 = arith.constant 0 : index
    %128 = vector.load %arg2[%c15, %c0_61, %c0_62] : memref<16x16x128xf32, #tpu.memory_space<vmem>>, vector<1x16x128xf32>
    %129 = vector.shape_cast %128 : vector<1x16x128xf32> to vector<16x128xf32>
    %130 = vector.shape_cast %127 : vector<16x128xf32> to vector<1x16x128xf32>
    tpu.vector_store %arg2[%c15, %c0_61, %c0_62], %130 {strides = array<i32>} : memref<16x16x128xf32, #tpu.memory_space<vmem>>, vector<1x16x128xf32>,
    %cst_63 = arith.constant 0.590043604 : f32
    %131 = vector.broadcast %cst_63 : f32 to vector<16x128xf32>
    %132 = arith.mulf %131, %28 : vector<16x128xf32>
    %c9 = arith.constant 9 : index
    %c0_64 = arith.constant 0 : index
    %c0_65 = arith.constant 0 : index
    %133 = vector.load %arg2[%c9, %c0_64, %c0_65] : memref<16x16x128xf32, #tpu.memory_space<vmem>>, vector<1x16x128xf32>
    %134 = vector.shape_cast %133 : vector<1x16x128xf32> to vector<16x128xf32>
    %135 = vector.shape_cast %132 : vector<16x128xf32> to vector<1x16x128xf32>
    tpu.vector_store %arg2[%c9, %c0_64, %c0_65], %135 {strides = array<i32>} : memref<16x16x128xf32, #tpu.memory_space<vmem>>, vector<1x16x128xf32>,
    return
  }
  func.func @transform_0(%arg0: i32) -> (i32, i32, i32) {
    %c0_i32 = arith.constant 0 : i32
    %c0_i32_0 = arith.constant 0 : i32
    %c0_i32_1 = arith.constant 0 : i32
    return %c0_i32, %arg0, %c0_i32_0 : i32, i32, i32
  }
  func.func @transform_1(%arg0: i32) -> (i32, i32, i32) {
    %c0_i32 = arith.constant 0 : i32
    %c0_i32_0 = arith.constant 0 : i32
    %c0_i32_1 = arith.constant 0 : i32
    return %c0_i32, %arg0, %c0_i32_0 : i32, i32, i32
  }
}

</mosaic_0001>

<llo_original>
// kernel: spherical_harmonics.1
$region0: #{spherical_harmonics.1}
  #allocation0 [shape = 'u32[]', space=smem, size = 0x4, offset = 0x4, fixed_abs, tag = 'smem constant byte address 0x4 - core index']
  #allocation1 [shape = 'u32[144,128]{1,0:T(1,128)}', space=vmem, size = 0x12000, scoped, tag = 'internal scratch']
  %s0 = inlined_call_operand.vmem [shape: f32[3,16,128], index: 0, kind: input, shape index: {}]
  %s1 = inlined_call_operand.vmem [shape: f32[16,16,128], index: 1, kind: output, shape index: {}]
  %s2 = sld [smem:[#allocation0]]
  $region14: #{spherical_harmonics.1} parent=0
    _
  %s4 = ssub.s32 1, %s2
  %s5 = scalar_select 0, %s4, %s2
  // Predicated region
  $region2: #{spherical_harmonics.1} parent=0 // pred_check
    _
  $region3: #{spherical_harmonics.1} parent=0 // pred_check_branch
    %7 = sbr.rel (0) target = $region5
  $region4: #{spherical_harmonics.1} parent=0 // pred_region
    _
  $region5: #{spherical_harmonics.1} parent=0 // pred_fallthru
    _
  %v8 = vld [vmem:[%s0] sm:$0xff]
  %v9 = vld [vmem:[%s0 + $0x8] sm:$0xff]
  %s10 = scalar_lea.vmem %s0, 16
  %v11 = vld [vmem:[%s10] sm:$0xff]
  %v12 = vld [vmem:[%s10 + $0x8] sm:$0xff]
  %s13 = scalar_lea.vmem %s0, 32
  %v14 = vld [vmem:[%s13] sm:$0xff]
  %v15 = vld [vmem:[%s13 + $0x8] sm:$0xff]
  %v16 = vmul.f32 %v8, %v8
  %v17 = vmul.f32 %v9, %v9
  %v18 = vmul.f32 %v11, %v11
  %v19 = vmul.f32 %v12, %v12
  %v20 = vadd.f32 %v16, %v18
  %v21 = vadd.f32 %v17, %v19
  %v22 = vmul.f32 %v14, %v14
  %v23 = vmul.f32 %v15, %v15
  %v24 = vadd.f32 %v20, %v22
  %v25 = vadd.f32 %v21, %v23
  %v26 = vmax.f32 %v24, 1.1754944e-38
  %v27 = vmax.f32 %v25, 1.1754944e-38
  %v28 = vrsqrt.pop %v26
  %v29 = vrsqrt.pop %v27
  %v30 = vmul.f32 %v8, %v28
  %v31 = vmul.f32 %v9, %v29
  %v32 = vmul.f32 %v11, %v28
  %v33 = vmul.f32 %v12, %v29
  %v34 = vmul.f32 %v14, %v28
  %v35 = vmul.f32 %v15, %v29
  %v36 = vmul.f32 %v30, %v30
  %v37 = vmul.f32 %v31, %v31
  %v38 = vmul.f32 %v32, %v32
  %v39 = vmul.f32 %v33, %v33
  %v40 = vsub.f32 %v36, %v38
  %v41 = vsub.f32 %v37, %v39
  %v42 = vmul.f32 %v32, %v30
  %v43 = vmul.f32 %v33, %v31
  %v44 = vadd.f32 %v42, %v42
  %v45 = vadd.f32 %v43, %v43
  %v46 = vmul.f32 %v40, %v30
  %v47 = vmul.f32 %v41, %v31
  %v48 = vmul.f32 %v44, %v32
  %v49 = vmul.f32 %v45, %v33
  %v50 = vsub.f32 %v46, %v48
  %v51 = vsub.f32 %v47, %v49
  %v52 = vmul.f32 %v44, %v30
  %v53 = vmul.f32 %v45, %v31
  %v54 = vmul.f32 %v40, %v32
  %v55 = vmul.f32 %v41, %v33
  %v56 = vadd.f32 %v52, %v54
  %v57 = vadd.f32 %v53, %v55
  %v58 = vmul.f32 %v34, 3.0
  %v59 = vmul.f32 %v35, 3.0
  %v60 = vmul.f32 %v34, 15.0
  %v61 = vmul.f32 %v35, 15.0
  %v62 = vmul.f32 %v58, %v34
  %v63 = vmul.f32 %v59, %v35
  %v64 = vsub.f32 %v62, 1.0
  %v65 = vsub.f32 %v63, 1.0
  %v66 = vmul.f32 %v64, 0.5
  %v67 = vmul.f32 %v65, 0.5
  %v68 = vmul.f32 %v34, 5.0
  %v69 = vmul.f32 %v35, 5.0
  %v70 = vmul.f32 %v68, %v66
  %v71 = vmul.f32 %v69, %v67
  %v72 = vmul.f32 %v34, 2.0
  %v73 = vmul.f32 %v35, 2.0
  %v74 = vsub.f32 %v70, %v72
  %v75 = vsub.f32 %v71, %v73
  %v76 = vmul.f32 %v74, 0.33333334
  %v77 = vmul.f32 %v75, 0.33333334
  %v78 = vmul.f32 %v68, %v58
  %v79 = vmul.f32 %v69, %v59
  %v80 = vsub.f32 %v78, 3.0
  %v81 = vsub.f32 %v79, 3.0
  %v82 = vmul.f32 %v80, 0.5
  %v83 = vmul.f32 %v81, 0.5
  %84 = vst [vmem:[%s1] sm:$0xff] 0.2820948
  %85 = vst [vmem:[%s1 + $0x8] sm:$0xff] 0.2820948
  %v86 = vmul.f32 %v34, 0.48860252
  %v87 = vmul.f32 %v35, 0.48860252
  %s88 = scalar_lea.vmem %s1, 32
  %89 = vst [vmem:[%s88] sm:$0xff] %v86
  %90 = vst [vmem:[%s88 + $0x8] sm:$0xff] %v87
  %v91 = vmul.f32 %v30, 0.48860252
  %v92 = vmul.f32 %v31, 0.48860252
  %s93 = scalar_lea.vmem %s1, 48
  %94 = vst [vmem:[%s93] sm:$0xff] %v91
  %95 = vst [vmem:[%s93 + $0x8] sm:$0xff] %v92
  %v96 = vmul.f32 %v32, 0.48860252
  %v97 = vmul.f32 %v33, 0.48860252
  %s98 = scalar_lea.vmem %s1, 16
  %99 = vst [vmem:[%s98] sm:$0xff] %v96
  %100 = vst [vmem:[%s98 + $0x8] sm:$0xff] %v97
  %v101 = vmul.f32 %v66, 0.63078314
  %v102 = vmul.f32 %v67, 0.63078314
  %s103 = scalar_lea.vmem %s1, 96
  %104 = vst [vmem:[%s103] sm:$0xff] %v101
  %105 = vst [vmem:[%s103 + $0x8] sm:$0xff] %v102
  %v106 = vmul.f32 %v58, 0.3641828
  %v107 = vmul.f32 %v59, 0.3641828
  %v108 = vmul.f32 %v106, %v30
  %v109 = vmul.f32 %v107, %v31
  %s110 = scalar_lea.vmem %s1, 112
  %111 = vst [vmem:[%s110] sm:$0xff] %v108
  %112 = vst [vmem:[%s110 + $0x8] sm:$0xff] %v109
  %v113 = vmul.f32 %v106, %v32
  %v114 = vmul.f32 %v107, %v33
  %s115 = scalar_lea.vmem %s1, 80
  %116 = vst [vmem:[%s115] sm:$0xff] %v113
  %117 = vst [vmem:[%s115 + $0x8] sm:$0xff] %v114
  %v118 = vmul.f32 %v40, 0.54627424
  %v119 = vmul.f32 %v41, 0.54627424
  %s120 = scalar_lea.vmem %s1, 128
  %121 = vst [vmem:[%s120] sm:$0xff] %v118
  %122 = vst [vmem:[%s120 + $0x8] sm:$0xff] %v119
  %v123 = vmul.f32 %v44, 0.54627424
  %v124 = vmul.f32 %v45, 0.54627424
  %s125 = scalar_lea.vmem %s1, 64
  %126 = vst [vmem:[%s125] sm:$0xff] %v123
  %127 = vst [vmem:[%s125 + $0x8] sm:$0xff] %v124
  %v128 = vmul.f32 %v76, 0.7463527
  %v129 = vmul.f32 %v77, 0.7463527
  %s130 = scalar_lea.vmem %s1, 192
  %131 = vst [vmem:[%s130] sm:$0xff] %v128
  %132 = vst [vmem:[%s130 + $0x8] sm:$0xff] %v129
  %v133 = vmul.f32 %v82, 0.3046972
  %v134 = vmul.f32 %v83, 0.3046972
  %v135 = vmul.f32 %v133, %v30
  %v136 = vmul.f32 %v134, %v31
  %s137 = scalar_lea.vmem %s1, 208
  %138 = vst [vmem:[%s137] sm:$0xff] %v135
  %139 = vst [vmem:[%s137 + $0x8] sm:$0xff] %v136
  %v140 = vmul.f32 %v133, %v32
  %v141 = vmul.f32 %v134, %v33
  %s142 = scalar_lea.vmem %s1, 176
  %143 = vst [vmem:[%s142] sm:$0xff] %v140
  %144 = vst [vmem:[%s142 + $0x8] sm:$0xff] %v141
  %v145 = vmul.f32 %v60, 0.09635372
  %v146 = vmul.f32 %v61, 0.09635372
  %v147 = vmul.f32 %v145, %v40
  %v148 = vmul.f32 %v146, %v41
  %s149 = scalar_lea.vmem %s1, 224
  %150 = vst [vmem:[%s149] sm:$0xff] %v147
  %151 = vst [vmem:[%s149 + $0x8] sm:$0xff] %v148
  %v152 = vmul.f32 %v145, %v44
  %v153 = vmul.f32 %v146, %v45
  %s154 = scalar_lea.vmem %s1, 160
  %155 = vst [vmem:[%s154] sm:$0xff] %v152
  %156 = vst [vmem:[%s154 + $0x8] sm:$0xff] %v153
  %v157 = vmul.f32 %v50, 0.5900436
  %v158 = vmul.f32 %v51, 0.5900436
  %s159 = scalar_lea.vmem %s1, 240
  %160 = vst [vmem:[%s159] sm:$0xff] %v157
  %161 = vst [vmem:[%s159 + $0x8] sm:$0xff] %v158
  %v162 = vmul.f32 %v56, 0.5900436
  %v163 = vmul.f32 %v57, 0.5900436
  %s164 = scalar_lea.vmem %s1, 144
  %165 = vst [vmem:[%s164] sm:$0xff] %v162
  %166 = vst [vmem:[%s164 + $0x8] sm:$0xff] %v163
  // Predicated region
  $region6: #{spherical_harmonics.1} parent=0 // pred_check
    _
  $region7: #{spherical_harmonics.1} parent=0 // pred_check_branch
    %168 = sbr.rel (0) target = $region9
  $region8: #{spherical_harmonics.1} parent=0 // pred_region
    _
  $region9: #{spherical_harmonics.1} parent=0 // pred_fallthru
    _
  // Predicated region
  $region10: #{spherical_harmonics.1} parent=0 // pred_check
    _
  $region11: #{spherical_harmonics.1} parent=0 // pred_check_branch
    %170 = sbr.rel (0) target = $region13
  $region12: #{spherical_harmonics.1} parent=0 // pred_region
    _
  $region13: #{spherical_harmonics.1} parent=0 // pred_fallthru
    _

</llo_original>
